<compile_context>
chip_gen: v5e
topology: v5e:2x2
jax: 0.10.0
libtpu: 0.0.40
codegen_flags: <defaults>
</compile_context>

<pallas_src>
import numpy as np
import jax
import jax.numpy as jnp
from jax import lax
from jax.experimental import pallas as pl
from jax.experimental.pallas import tpu as pltpu

BATCH = 2
NUM_PATCHES = 16
EMBED_DIM = 32
HIDDEN_DIM = 64
NUM_HEADS = 4
HEAD_DIM = EMBED_DIM // NUM_HEADS
EPS_ATTN = 1e-6   # fast-transformers LinearAttention eps
EPS_LN = 1e-5     # nn.LayerNorm default eps


def _elu_p1(x):
    # elu(x) + 1 == x + 1 (x > 0) else exp(x)
    return jnp.where(x > 0, x + 1.0, jnp.exp(x))


def _layer_norm(h, gamma, beta):
    mu = jnp.mean(h, axis=-1, keepdims=True)
    var = jnp.mean((h - mu) ** 2, axis=-1, keepdims=True)
    return (h - mu) * lax.rsqrt(var + EPS_LN) * gamma + beta


def _make_kernel(batch, n, d):
    # contract axis 0 of both operands: computes kf_b.T @ v_b without materializing a transpose
    contract_rows = (((0,), (0,)), ((), ()))

    def kernel(x_ref, mask_ref, ones_ref,
               wq_ref, bq_ref, wk_ref, bk_ref, wv_ref, bv_ref,
               wo_ref, bo_ref, g1_ref, be1_ref,
               wf1_ref, bf1_ref, wf2_ref, bf2_ref, g2_ref, be2_ref,
               o_ref, attn_ref):
        x = x_ref[...]                    # (B*N, D), f32
        head_mask = mask_ref[...]         # (D, D) block-diagonal over heads (constant input)
        ones_row = ones_ref[...]          # (1, N) constant input

        # ---- un-fused Q/K/V projections: three clean lane-0 MXU passes (no lane-offset slices)
        q = jnp.dot(x, wq_ref[...], preferred_element_type=jnp.float32) + bq_ref[...]
        k = jnp.dot(x, wk_ref[...], preferred_element_type=jnp.float32) + bk_ref[...]
        v = jnp.dot(x, wv_ref[...], preferred_element_type=jnp.float32) + bv_ref[...]

        qf = _elu_p1(q)                   # feature map; key mask is all-ones -> no masking
        kf = _elu_p1(k)

        # ---- LinearAttention, block-diagonal over heads; per-batch results written directly
        #      into a VMEM scratch at tile-aligned sublane offsets (no concat / relayout).
        for b in range(batch):            # static unroll, B is tiny
            r0 = b * n
            qf_b = qf[r0:r0 + n, :]       # static, sublane-tile-aligned slices (n = 16)
            kf_b = kf[r0:r0 + n, :]
            v_b = v[r0:r0 + n, :]

            kv = lax.dot_general(kf_b, v_b, contract_rows,
                                 preferred_element_type=jnp.float32) * head_mask    # (D, D)
            num = jnp.dot(qf_b, kv, preferred_element_type=jnp.float32)             # (N, D)
            # ksum on the MXU (M=1 matmul) instead of a cross-sublane XLU reduction
            ksum = jnp.dot(ones_row, kf_b, preferred_element_type=jnp.float32)      # (1, D)
            den = jnp.dot(qf_b * ksum, head_mask,
                          preferred_element_type=jnp.float32)                       # (N, D)
            # exact divide (approximate reciprocal would violate the 1e-4 tolerance)
            attn_ref[pl.ds(r0, n), :] = num * (1.0 / (den + EPS_ATTN))

        attn = jnp.dot(attn_ref[...], wo_ref[...],
                       preferred_element_type=jnp.float32) + bo_ref[...]

        # ---- residual + LayerNorm 1 (dropout p=0 -> identity)
        x1 = _layer_norm(x + attn, g1_ref[...], be1_ref[...])

        # ---- feed-forward MLP
        h = jnp.dot(x1, wf1_ref[...], preferred_element_type=jnp.float32) + bf1_ref[...]
        h = jnp.maximum(h, 0.0)
        ff = jnp.dot(h, wf2_ref[...], preferred_element_type=jnp.float32) + bf2_ref[...]

        # ---- residual + LayerNorm 2
        o_ref[...] = _layer_norm(x1 + ff, g2_ref[...], be2_ref[...])

    return kernel


@jax.jit
def attention_block(x, params):
    B, N, D = x.shape
    head_dim = D // NUM_HEADS
    (wq, bq, wk, bk, wv, bv, wo, bo, g1, be1,
     wf1, bf1, wf2, bf2, g2, be2) = params

    # compile-time constants (trace-time numpy -> baked into the jitted executable)
    head_ids = np.arange(D, dtype=np.int32) // head_dim
    head_mask = (head_ids[:, None] == head_ids[None, :]).astype(np.float32)   # (D, D)
    ones_row = np.ones((1, N), np.float32)                                    # (1, N)

    kernel = _make_kernel(B, N, D)
    out = pl.pallas_call(
        kernel,
        out_shape=jax.ShapeDtypeStruct((B * N, D), jnp.float32),
        # no grid / no BlockSpecs: every operand is a whole-array VMEM block, single invocation
        scratch_shapes=[pltpu.VMEM((B * N, D), jnp.float32)],   # attention output scratch
    )(x.reshape(B * N, D), head_mask, ones_row,
      wq, bq, wk, bk, wv, bv, wo, bo,
      g1, be1, wf1, bf1, wf2, bf2, g2, be2)
    return out.reshape(B, N, D)


def init_params(key):
    ks = jax.random.split(key, 8)
    s = 0.02
    wq = s * jax.random.normal(ks[0], (EMBED_DIM, EMBED_DIM), jnp.float32)
    wk = s * jax.random.normal(ks[1], (EMBED_DIM, EMBED_DIM), jnp.float32)
    wv = s * jax.random.normal(ks[2], (EMBED_DIM, EMBED_DIM), jnp.float32)
    wo = s * jax.random.normal(ks[3], (EMBED_DIM, EMBED_DIM), jnp.float32)
    bq = 0.01 * jax.random.normal(ks[4], (1, EMBED_DIM), jnp.float32)
    bk = 0.01 * jax.random.normal(ks[5], (1, EMBED_DIM), jnp.float32)
    bv = 0.01 * jax.random.normal(ks[6], (1, EMBED_DIM), jnp.float32)
    bo = jnp.zeros((1, EMBED_DIM), jnp.float32)
    g1 = jnp.ones((1, EMBED_DIM), jnp.float32)
    be1 = jnp.zeros((1, EMBED_DIM), jnp.float32)
    wf1 = s * jax.random.normal(ks[7], (EMBED_DIM, HIDDEN_DIM), jnp.float32)
    bf1 = jnp.zeros((1, HIDDEN_DIM), jnp.float32)
    wf2 = s * jax.random.normal(jax.random.fold_in(key, 99), (HIDDEN_DIM, EMBED_DIM), jnp.float32)
    bf2 = jnp.zeros((1, EMBED_DIM), jnp.float32)
    g2 = jnp.ones((1, EMBED_DIM), jnp.float32)
    be2 = jnp.zeros((1, EMBED_DIM), jnp.float32)
    return [wq, bq, wk, bk, wv, bv, wo, bo, g1, be1, wf1, bf1, wf2, bf2, g2, be2]


def reference(x, params):
    (wq, bq, wk, bk, wv, bv, wo, bo, g1, be1, wf1, bf1, wf2, bf2, g2, be2) = params
    q = x @ wq + bq
    k = x @ wk + bk
    v = x @ wv + bv
    B, N, D = x.shape
    q = q.reshape(B, N, NUM_HEADS, HEAD_DIM)
    k = k.reshape(B, N, NUM_HEADS, HEAD_DIM)
    v = v.reshape(B, N, NUM_HEADS, HEAD_DIM)
    Q = jnp.where(q > 0, q + 1.0, jnp.exp(q))
    K = jnp.where(k > 0, k + 1.0, jnp.exp(k))
    KV = jnp.einsum("nshd,nshm->nhmd", K, v)
    Z = 1.0 / (jnp.einsum("nlhd,nhd->nlh", Q, K.sum(axis=1)) + EPS_ATTN)
    V = jnp.einsum("nlhd,nhmd,nlh->nlhm", Q, KV, Z).reshape(B, N, D)
    attn = V @ wo + bo

    def ln(h, g, b):
        mu = jnp.mean(h, axis=-1, keepdims=True)
        var = jnp.mean((h - mu) ** 2, axis=-1, keepdims=True)
        return (h - mu) / jnp.sqrt(var + EPS_LN) * g + b

    x1 = ln(x + attn, g1, be1)
    ff = jnp.maximum(x1 @ wf1 + bf1, 0.0) @ wf2 + bf2
    return ln(x1 + ff, g2, be2)


if __name__ == "__main__":
    key = jax.random.PRNGKey(0)
    kx, kp = jax.random.split(key)
    x = jax.random.normal(kx, (BATCH, NUM_PATCHES, EMBED_DIM), jnp.float32)
    params = init_params(kp)

    out = jax.block_until_ready(attention_block(x, params))

    ref = reference(x, params)
    assert out.shape == (BATCH, NUM_PATCHES, EMBED_DIM)
    assert jnp.allclose(out, ref, atol=1e-4, rtol=1e-4), float(jnp.max(jnp.abs(out - ref)))
    print("KERNEL_OK")
</pallas_src>

<mosaic_0001>
module attributes {stable_mosaic.version = 11 : i64} {
  func.func @kernel(%arg0: memref<32x32xf32, #tpu.memory_space<vmem>>, %arg1: memref<32x32xf32, #tpu.memory_space<vmem>>, %arg2: memref<1x16xf32, #tpu.memory_space<vmem>>, %arg3: memref<32x32xf32, #tpu.memory_space<vmem>>, %arg4: memref<1x32xf32, #tpu.memory_space<vmem>>, %arg5: memref<32x32xf32, #tpu.memory_space<vmem>>, %arg6: memref<1x32xf32, #tpu.memory_space<vmem>>, %arg7: memref<32x32xf32, #tpu.memory_space<vmem>>, %arg8: memref<1x32xf32, #tpu.memory_space<vmem>>, %arg9: memref<32x32xf32, #tpu.memory_space<vmem>>, %arg10: memref<1x32xf32, #tpu.memory_space<vmem>>, %arg11: memref<1x32xf32, #tpu.memory_space<vmem>>, %arg12: memref<1x32xf32, #tpu.memory_space<vmem>>, %arg13: memref<32x64xf32, #tpu.memory_space<vmem>>, %arg14: memref<1x64xf32, #tpu.memory_space<vmem>>, %arg15: memref<64x32xf32, #tpu.memory_space<vmem>>, %arg16: memref<1x32xf32, #tpu.memory_space<vmem>>, %arg17: memref<1x32xf32, #tpu.memory_space<vmem>>, %arg18: memref<1x32xf32, #tpu.memory_space<vmem>>, %arg19: memref<32x32xf32, #tpu.memory_space<vmem>>, %arg20: memref<32x32xf32, #tpu.memory_space<vmem>>) attributes {dimension_semantics = [], scalar_prefetch = 0 : i64, scratch_operands = 1 : i64, tpu.core_type = #tpu.core_type<tc>} {
    %c0 = arith.constant 0 : index
    %c0_0 = arith.constant 0 : index
    %0 = vector.load %arg0[%c0, %c0_0] : memref<32x32xf32, #tpu.memory_space<vmem>>, vector<32x32xf32>
    %c0_1 = arith.constant 0 : index
    %c0_2 = arith.constant 0 : index
    %1 = vector.load %arg1[%c0_1, %c0_2] : memref<32x32xf32, #tpu.memory_space<vmem>>, vector<32x32xf32>
    %c0_3 = arith.constant 0 : index
    %c0_4 = arith.constant 0 : index
    %2 = vector.load %arg2[%c0_3, %c0_4] : memref<1x16xf32, #tpu.memory_space<vmem>>, vector<1x16xf32>
    %c0_5 = arith.constant 0 : index
    %c0_6 = arith.constant 0 : index
    %3 = vector.load %arg3[%c0_5, %c0_6] : memref<32x32xf32, #tpu.memory_space<vmem>>, vector<32x32xf32>
    %cst = arith.constant dense<0.000000e+00> : vector<32x32xf32>
    %4 = tpu.matmul %0, %3, %cst {dimension_numbers = #tpu.dot_dimension_numbers<[1], [0], [0], [1], [0, 0, 1, 1], [], []>} : vector<32x32xf32>, vector<32x32xf32>, vector<32x32xf32> -> vector<32x32xf32>
    %c0_7 = arith.constant 0 : index
    %c0_8 = arith.constant 0 : index
    %5 = vector.load %arg4[%c0_7, %c0_8] : memref<1x32xf32, #tpu.memory_space<vmem>>, vector<1x32xf32>
    %6 = vector.broadcast %5 : vector<1x32xf32> to vector<32x32xf32>
    %7 = arith.addf %4, %6 : vector<32x32xf32>
    %c0_9 = arith.constant 0 : index
    %c0_10 = arith.constant 0 : index
    %8 = vector.load %arg5[%c0_9, %c0_10] : memref<32x32xf32, #tpu.memory_space<vmem>>, vector<32x32xf32>
    %cst_11 = arith.constant dense<0.000000e+00> : vector<32x32xf32>
    %9 = tpu.matmul %0, %8, %cst_11 {dimension_numbers = #tpu.dot_dimension_numbers<[1], [0], [0], [1], [0, 0, 1, 1], [], []>} : vector<32x32xf32>, vector<32x32xf32>, vector<32x32xf32> -> vector<32x32xf32>
    %c0_12 = arith.constant 0 : index
    %c0_13 = arith.constant 0 : index
    %10 = vector.load %arg6[%c0_12, %c0_13] : memref<1x32xf32, #tpu.memory_space<vmem>>, vector<1x32xf32>
    %11 = vector.broadcast %10 : vector<1x32xf32> to vector<32x32xf32>
    %12 = arith.addf %9, %11 : vector<32x32xf32>
    %c0_14 = arith.constant 0 : index
    %c0_15 = arith.constant 0 : index
    %13 = vector.load %arg7[%c0_14, %c0_15] : memref<32x32xf32, #tpu.memory_space<vmem>>, vector<32x32xf32>
    %cst_16 = arith.constant dense<0.000000e+00> : vector<32x32xf32>
    %14 = tpu.matmul %0, %13, %cst_16 {dimension_numbers = #tpu.dot_dimension_numbers<[1], [0], [0], [1], [0, 0, 1, 1], [], []>} : vector<32x32xf32>, vector<32x32xf32>, vector<32x32xf32> -> vector<32x32xf32>
    %c0_17 = arith.constant 0 : index
    %c0_18 = arith.constant 0 : index
    %15 = vector.load %arg8[%c0_17, %c0_18] : memref<1x32xf32, #tpu.memory_space<vmem>>, vector<1x32xf32>
    %16 = vector.broadcast %15 : vector<1x32xf32> to vector<32x32xf32>
    %17 = arith.addf %14, %16 : vector<32x32xf32>
    %cst_19 = arith.constant 0.000000e+00 : f32
    %18 = vector.broadcast %cst_19 : f32 to vector<32x32xf32>
    %19 = arith.cmpf ogt, %7, %18 : vector<32x32xf32>
    %cst_20 = arith.constant 1.000000e+00 : f32
    %20 = vector.broadcast %cst_20 : f32 to vector<32x32xf32>
    %21 = arith.addf %7, %20 : vector<32x32xf32>
    %22 = math.exp %7 : vector<32x32xf32>
    %23 = arith.select %19, %21, %22 : vector<32x32xi1>, vector<32x32xf32>
    %cst_21 = arith.constant 0.000000e+00 : f32
    %24 = vector.broadcast %cst_21 : f32 to vector<32x32xf32>
    %25 = arith.cmpf ogt, %12, %24 : vector<32x32xf32>
    %cst_22 = arith.constant 1.000000e+00 : f32
    %26 = vector.broadcast %cst_22 : f32 to vector<32x32xf32>
    %27 = arith.addf %12, %26 : vector<32x32xf32>
    %28 = math.exp %12 : vector<32x32xf32>
    %29 = arith.select %25, %27, %28 : vector<32x32xi1>, vector<32x32xf32>
    %30 = vector.extract_strided_slice %23 {offsets = [0, 0], sizes = [16, 32], strides = [1, 1]} : vector<32x32xf32> to vector<16x32xf32>
    %31 = vector.extract_strided_slice %29 {offsets = [0, 0], sizes = [16, 32], strides = [1, 1]} : vector<32x32xf32> to vector<16x32xf32>
    %32 = vector.extract_strided_slice %17 {offsets = [0, 0], sizes = [16, 32], strides = [1, 1]} : vector<32x32xf32> to vector<16x32xf32>
    %cst_23 = arith.constant dense<0.000000e+00> : vector<32x32xf32>
    %33 = tpu.matmul %31, %32, %cst_23 {dimension_numbers = #tpu.dot_dimension_numbers<[0], [0], [1], [1], [0, 1, 1, 1], [], []>} : vector<16x32xf32>, vector<16x32xf32>, vector<32x32xf32> -> vector<32x32xf32>
    %34 = arith.mulf %33, %1 : vector<32x32xf32>
    %cst_24 = arith.constant dense<0.000000e+00> : vector<16x32xf32>
    %35 = tpu.matmul %30, %34, %cst_24 {dimension_numbers = #tpu.dot_dimension_numbers<[1], [0], [0], [1], [0, 0, 1, 1], [], []>} : vector<16x32xf32>, vector<32x32xf32>, vector<16x32xf32> -> vector<16x32xf32>
    %cst_25 = arith.constant dense<0.000000e+00> : vector<1x32xf32>
    %36 = tpu.matmul %2, %31, %cst_25 {dimension_numbers = #tpu.dot_dimension_numbers<[1], [0], [0], [1], [0, 0, 1, 1], [], []>} : vector<1x16xf32>, vector<16x32xf32>, vector<1x32xf32> -> vector<1x32xf32>
    %37 = vector.broadcast %36 : vector<1x32xf32> to vector<16x32xf32>
    %38 = arith.mulf %30, %37 : vector<16x32xf32>
    %cst_26 = arith.constant dense<0.000000e+00> : vector<16x32xf32>
    %39 = tpu.matmul %38, %1, %cst_26 {dimension_numbers = #tpu.dot_dimension_numbers<[1], [0], [0], [1], [0, 0, 1, 1], [], []>} : vector<16x32xf32>, vector<32x32xf32>, vector<16x32xf32> -> vector<16x32xf32>
    %cst_27 = arith.constant 9.99999997E-7 : f32
    %40 = vector.broadcast %cst_27 : f32 to vector<16x32xf32>
    %41 = arith.addf %39, %40 : vector<16x32xf32>
    %cst_28 = arith.constant 1.000000e+00 : f32
    %42 = vector.broadcast %cst_28 : f32 to vector<16x32xf32>
    %43 = arith.divf %42, %41 : vector<16x32xf32>
    %44 = arith.mulf %35, %43 : vector<16x32xf32>
    %c0_29 = arith.constant 0 : index
    %c0_30 = arith.constant 0 : index
    %45 = vector.load %arg20[%c0_29, %c0_30] : memref<32x32xf32, #tpu.memory_space<vmem>>, vector<16x32xf32>
    tpu.vector_store %arg20[%c0_29, %c0_30], %44 {strides = array<i32>} : memref<32x32xf32, #tpu.memory_space<vmem>>, vector<16x32xf32>,
    %46 = vector.extract_strided_slice %23 {offsets = [16, 0], sizes = [16, 32], strides = [1, 1]} : vector<32x32xf32> to vector<16x32xf32>
    %47 = vector.extract_strided_slice %29 {offsets = [16, 0], sizes = [16, 32], strides = [1, 1]} : vector<32x32xf32> to vector<16x32xf32>
    %48 = vector.extract_strided_slice %17 {offsets = [16, 0], sizes = [16, 32], strides = [1, 1]} : vector<32x32xf32> to vector<16x32xf32>
    %cst_31 = arith.constant dense<0.000000e+00> : vector<32x32xf32>
    %49 = tpu.matmul %47, %48, %cst_31 {dimension_numbers = #tpu.dot_dimension_numbers<[0], [0], [1], [1], [0, 1, 1, 1], [], []>} : vector<16x32xf32>, vector<16x32xf32>, vector<32x32xf32> -> vector<32x32xf32>
    %50 = arith.mulf %49, %1 : vector<32x32xf32>
    %cst_32 = arith.constant dense<0.000000e+00> : vector<16x32xf32>
    %51 = tpu.matmul %46, %50, %cst_32 {dimension_numbers = #tpu.dot_dimension_numbers<[1], [0], [0], [1], [0, 0, 1, 1], [], []>} : vector<16x32xf32>, vector<32x32xf32>, vector<16x32xf32> -> vector<16x32xf32>
    %cst_33 = arith.constant dense<0.000000e+00> : vector<1x32xf32>
    %52 = tpu.matmul %2, %47, %cst_33 {dimension_numbers = #tpu.dot_dimension_numbers<[1], [0], [0], [1], [0, 0, 1, 1], [], []>} : vector<1x16xf32>, vector<16x32xf32>, vector<1x32xf32> -> vector<1x32xf32>
    %53 = vector.broadcast %52 : vector<1x32xf32> to vector<16x32xf32>
    %54 = arith.mulf %46, %53 : vector<16x32xf32>
    %cst_34 = arith.constant dense<0.000000e+00> : vector<16x32xf32>
    %55 = tpu.matmul %54, %1, %cst_34 {dimension_numbers = #tpu.dot_dimension_numbers<[1], [0], [0], [1], [0, 0, 1, 1], [], []>} : vector<16x32xf32>, vector<32x32xf32>, vector<16x32xf32> -> vector<16x32xf32>
    %cst_35 = arith.constant 9.99999997E-7 : f32
    %56 = vector.broadcast %cst_35 : f32 to vector<16x32xf32>
    %57 = arith.addf %55, %56 : vector<16x32xf32>
    %cst_36 = arith.constant 1.000000e+00 : f32
    %58 = vector.broadcast %cst_36 : f32 to vector<16x32xf32>
    %59 = arith.divf %58, %57 : vector<16x32xf32>
    %60 = arith.mulf %51, %59 : vector<16x32xf32>
    %c16 = arith.constant 16 : index
    %c0_37 = arith.constant 0 : index
    %61 = vector.load %arg20[%c16, %c0_37] : memref<32x32xf32, #tpu.memory_space<vmem>>, vector<16x32xf32>
    tpu.vector_store %arg20[%c16, %c0_37], %60 {strides = array<i32>} : memref<32x32xf32, #tpu.memory_space<vmem>>, vector<16x32xf32>,
    %c0_38 = arith.constant 0 : index
    %c0_39 = arith.constant 0 : index
    %62 = vector.load %arg20[%c0_38, %c0_39] : memref<32x32xf32, #tpu.memory_space<vmem>>, vector<32x32xf32>
    %c0_40 = arith.constant 0 : index
    %c0_41 = arith.constant 0 : index
    %63 = vector.load %arg9[%c0_40, %c0_41] : memref<32x32xf32, #tpu.memory_space<vmem>>, vector<32x32xf32>
    %cst_42 = arith.constant dense<0.000000e+00> : vector<32x32xf32>
    %64 = tpu.matmul %62, %63, %cst_42 {dimension_numbers = #tpu.dot_dimension_numbers<[1], [0], [0], [1], [0, 0, 1, 1], [], []>} : vector<32x32xf32>, vector<32x32xf32>, vector<32x32xf32> -> vector<32x32xf32>
    %c0_43 = arith.constant 0 : index
    %c0_44 = arith.constant 0 : index
    %65 = vector.load %arg10[%c0_43, %c0_44] : memref<1x32xf32, #tpu.memory_space<vmem>>, vector<1x32xf32>
    %66 = vector.broadcast %65 : vector<1x32xf32> to vector<32x32xf32>
    %67 = arith.addf %64, %66 : vector<32x32xf32>
    %68 = arith.addf %0, %67 : vector<32x32xf32>
    %c0_45 = arith.constant 0 : index
    %c0_46 = arith.constant 0 : index
    %69 = vector.load %arg11[%c0_45, %c0_46] : memref<1x32xf32, #tpu.memory_space<vmem>>, vector<1x32xf32>
    %c0_47 = arith.constant 0 : index
    %c0_48 = arith.constant 0 : index
    %70 = vector.load %arg12[%c0_47, %c0_48] : memref<1x32xf32, #tpu.memory_space<vmem>>, vector<1x32xf32>
    %cst_49 = arith.constant dense<0.000000e+00> : vector<32xf32>
    %71 = vector.multi_reduction <add>, %68, %cst_49 [1] : vector<32x32xf32> to vector<32xf32>
    %72 = vector.shape_cast %71 : vector<32xf32> to vector<32x1xf32>
    %cst_50 = arith.constant 3.200000e+01 : f32
    %73 = vector.broadcast %cst_50 : f32 to vector<32x1xf32>
    %74 = arith.divf %72, %73 : vector<32x1xf32>
    %75 = vector.broadcast %74 : vector<32x1xf32> to vector<32x32xf32>
    %76 = arith.subf %68, %75 : vector<32x32xf32>
    %77 = arith.mulf %76, %76 : vector<32x32xf32>
    %cst_51 = arith.constant dense<0.000000e+00> : vector<32xf32>
    %78 = vector.multi_reduction <add>, %77, %cst_51 [1] : vector<32x32xf32> to vector<32xf32>
    %79 = vector.shape_cast %78 : vector<32xf32> to vector<32x1xf32>
    %cst_52 = arith.constant 3.200000e+01 : f32
    %80 = vector.broadcast %cst_52 : f32 to vector<32x1xf32>
    %81 = arith.divf %79, %80 : vector<32x1xf32>
    %82 = vector.broadcast %74 : vector<32x1xf32> to vector<32x32xf32>
    %83 = arith.subf %68, %82 : vector<32x32xf32>
    %cst_53 = arith.constant 9.99999974E-6 : f32
    %84 = vector.broadcast %cst_53 : f32 to vector<32x1xf32>
    %85 = arith.addf %81, %84 : vector<32x1xf32>
    %86 = math.rsqrt %85 : vector<32x1xf32>
    %87 = vector.broadcast %86 : vector<32x1xf32> to vector<32x32xf32>
    %88 = arith.mulf %83, %87 : vector<32x32xf32>
    %89 = vector.broadcast %69 : vector<1x32xf32> to vector<32x32xf32>
    %90 = arith.mulf %88, %89 : vector<32x32xf32>
    %91 = vector.broadcast %70 : vector<1x32xf32> to vector<32x32xf32>
    %92 = arith.addf %90, %91 : vector<32x32xf32>
    %c0_54 = arith.constant 0 : index
    %c0_55 = arith.constant 0 : index
    %93 = vector.load %arg13[%c0_54, %c0_55] : memref<32x64xf32, #tpu.memory_space<vmem>>, vector<32x64xf32>
    %cst_56 = arith.constant dense<0.000000e+00> : vector<32x64xf32>
    %94 = tpu.matmul %92, %93, %cst_56 {dimension_numbers = #tpu.dot_dimension_numbers<[1], [0], [0], [1], [0, 0, 1, 1], [], []>} : vector<32x32xf32>, vector<32x64xf32>, vector<32x64xf32> -> vector<32x64xf32>
    %c0_57 = arith.constant 0 : index
    %c0_58 = arith.constant 0 : index
    %95 = vector.load %arg14[%c0_57, %c0_58] : memref<1x64xf32, #tpu.memory_space<vmem>>, vector<1x64xf32>
    %96 = vector.broadcast %95 : vector<1x64xf32> to vector<32x64xf32>
    %97 = arith.addf %94, %96 : vector<32x64xf32>
    %cst_59 = arith.constant 0.000000e+00 : f32
    %98 = vector.broadcast %cst_59 : f32 to vector<32x64xf32>
    %99 = arith.maximumf %97, %98 : vector<32x64xf32>
    %c0_60 = arith.constant 0 : index
    %c0_61 = arith.constant 0 : index
    %100 = vector.load %arg15[%c0_60, %c0_61] : memref<64x32xf32, #tpu.memory_space<vmem>>, vector<64x32xf32>
    %cst_62 = arith.constant dense<0.000000e+00> : vector<32x32xf32>
    %101 = tpu.matmul %99, %100, %cst_62 {dimension_numbers = #tpu.dot_dimension_numbers<[1], [0], [0], [1], [0, 0, 1, 1], [], []>} : vector<32x64xf32>, vector<64x32xf32>, vector<32x32xf32> -> vector<32x32xf32>
    %c0_63 = arith.constant 0 : index
    %c0_64 = arith.constant 0 : index
    %102 = vector.load %arg16[%c0_63, %c0_64] : memref<1x32xf32, #tpu.memory_space<vmem>>, vector<1x32xf32>
    %103 = vector.broadcast %102 : vector<1x32xf32> to vector<32x32xf32>
    %104 = arith.addf %101, %103 : vector<32x32xf32>
    %105 = arith.addf %92, %104 : vector<32x32xf32>
    %c0_65 = arith.constant 0 : index
    %c0_66 = arith.constant 0 : index
    %106 = vector.load %arg17[%c0_65, %c0_66] : memref<1x32xf32, #tpu.memory_space<vmem>>, vector<1x32xf32>
    %c0_67 = arith.constant 0 : index
    %c0_68 = arith.constant 0 : index
    %107 = vector.load %arg18[%c0_67, %c0_68] : memref<1x32xf32, #tpu.memory_space<vmem>>, vector<1x32xf32>
    %cst_69 = arith.constant dense<0.000000e+00> : vector<32xf32>
    %108 = vector.multi_reduction <add>, %105, %cst_69 [1] : vector<32x32xf32> to vector<32xf32>
    %109 = vector.shape_cast %108 : vector<32xf32> to vector<32x1xf32>
    %cst_70 = arith.constant 3.200000e+01 : f32
    %110 = vector.broadcast %cst_70 : f32 to vector<32x1xf32>
    %111 = arith.divf %109, %110 : vector<32x1xf32>
    %112 = vector.broadcast %111 : vector<32x1xf32> to vector<32x32xf32>
    %113 = arith.subf %105, %112 : vector<32x32xf32>
    %114 = arith.mulf %113, %113 : vector<32x32xf32>
    %cst_71 = arith.constant dense<0.000000e+00> : vector<32xf32>
    %115 = vector.multi_reduction <add>, %114, %cst_71 [1] : vector<32x32xf32> to vector<32xf32>
    %116 = vector.shape_cast %115 : vector<32xf32> to vector<32x1xf32>
    %cst_72 = arith.constant 3.200000e+01 : f32
    %117 = vector.broadcast %cst_72 : f32 to vector<32x1xf32>
    %118 = arith.divf %116, %117 : vector<32x1xf32>
    %119 = vector.broadcast %111 : vector<32x1xf32> to vector<32x32xf32>
    %120 = arith.subf %105, %119 : vector<32x32xf32>
    %cst_73 = arith.constant 9.99999974E-6 : f32
    %121 = vector.broadcast %cst_73 : f32 to vector<32x1xf32>
    %122 = arith.addf %118, %121 : vector<32x1xf32>
    %123 = math.rsqrt %122 : vector<32x1xf32>
    %124 = vector.broadcast %123 : vector<32x1xf32> to vector<32x32xf32>
    %125 = arith.mulf %120, %124 : vector<32x32xf32>
    %126 = vector.broadcast %106 : vector<1x32xf32> to vector<32x32xf32>
    %127 = arith.mulf %125, %126 : vector<32x32xf32>
    %128 = vector.broadcast %107 : vector<1x32xf32> to vector<32x32xf32>
    %129 = arith.addf %127, %128 : vector<32x32xf32>
    %c0_74 = arith.constant 0 : index
    %c0_75 = arith.constant 0 : index
    %130 = vector.load %arg19[%c0_74, %c0_75] : memref<32x32xf32, #tpu.memory_space<vmem>>, vector<32x32xf32>
    tpu.vector_store %arg19[%c0_74, %c0_75], %129 {strides = array<i32>} : memref<32x32xf32, #tpu.memory_space<vmem>>, vector<32x32xf32>,
    return
  }
}

</mosaic_0001>

<llo_original>
// kernel: attention_block.1
$region0: #{attention_block.1}
  #allocation0 [shape = 'u32[]', space=smem, size = 0x4, offset = 0x4, fixed_abs, tag = 'smem constant byte address 0x4 - core index']
  #allocation1 [shape = 'u32[72,128]{1,0:T(1,128)}', space=vmem, size = 0x9000, scoped, tag = 'internal scratch']
  #allocation2 [shape = 'f32[32,32]{1,0:T(8,128)}', space=vmem, size = 0x4000, scoped, tag = 'scratch operand']
  %s0 = inlined_call_operand.vmem [shape: f32[32,32], index: 0, kind: input, shape index: {}]
  %s1 = inlined_call_operand.hbm [shape: f32[32,32], index: 1, kind: input, shape index: {}]
  %s2 = inlined_call_operand.vmem [shape: f32[1,16], index: 2, kind: input, shape index: {}]
  %s3 = inlined_call_operand.vmem [shape: f32[32,32], index: 3, kind: input, shape index: {}]
  %s4 = inlined_call_operand.vmem [shape: f32[1,32], index: 4, kind: input, shape index: {}]
  %s5 = inlined_call_operand.vmem [shape: f32[32,32], index: 5, kind: input, shape index: {}]
  %s6 = inlined_call_operand.vmem [shape: f32[1,32], index: 6, kind: input, shape index: {}]
  %s7 = inlined_call_operand.hbm [shape: f32[32,32], index: 7, kind: input, shape index: {}]
  %s8 = inlined_call_operand.vmem [shape: f32[1,32], index: 8, kind: input, shape index: {}]
  %s9 = inlined_call_operand.hbm [shape: f32[32,32], index: 9, kind: input, shape index: {}]
  %s10 = inlined_call_operand.vmem [shape: f32[1,32], index: 10, kind: input, shape index: {}]
  %s11 = inlined_call_operand.vmem [shape: f32[1,32], index: 11, kind: input, shape index: {}]
  %s12 = inlined_call_operand.vmem [shape: f32[1,32], index: 12, kind: input, shape index: {}]
  %s13 = inlined_call_operand.hbm [shape: f32[32,64], index: 13, kind: input, shape index: {}]
  %s14 = inlined_call_operand.vmem [shape: f32[1,64], index: 14, kind: input, shape index: {}]
  %s15 = inlined_call_operand.vmem [shape: f32[64,32], index: 15, kind: input, shape index: {}]
  %s16 = inlined_call_operand.vmem [shape: f32[1,32], index: 16, kind: input, shape index: {}]
  %s17 = inlined_call_operand.vmem [shape: f32[1,32], index: 17, kind: input, shape index: {}]
  %s18 = inlined_call_operand.vmem [shape: f32[1,32], index: 18, kind: input, shape index: {}]
  %s19 = inlined_call_operand.hbm [shape: f32[32,32], index: 19, kind: output, shape index: {}]
  %s20 = sld [smem:[#allocation0]]
  $region102: #{attention_block.1} parent=0
    _
  %s22 = ssub.s32 1, %s20
  %s23 = scalar_select 0, %s22, %s20
  $region1: #{attention_block.1} parent=0
    #allocation3 [shape = 'u8[16384]{0}', space=vmem, size = 0x4000, scoped, tag = 'input window, operand 1, single buffered']
    #allocation4 [shape = 's32[1]{0}', space=sflag, size = 0x4, scoped, tag = 'scoped memory for attention_block.1']
    #allocation5 [shape = 's32[1]{0}', space=sflag, size = 0x4, scoped, tag = 'scoped memory for attention_block.1']
    #allocation6 [shape = 'u8[16384]{0}', space=vmem, size = 0x4000, scoped, tag = 'input window, operand 7, single buffered']
    #allocation7 [shape = 's32[1]{0}', space=sflag, size = 0x4, scoped, tag = 'scoped memory for attention_block.1']
    #allocation8 [shape = 'u8[16384]{0}', space=vmem, size = 0x4000, scoped, tag = 'input window, operand 9, single buffered']
    #allocation9 [shape = 'u8[16384]{0}', space=vmem, size = 0x4000, scoped, tag = 'input window, operand 13, single buffered']
    #allocation10 [shape = 's32[1]{0}', space=sflag, size = 0x4, scoped, tag = 'scoped memory for attention_block.1']
    #allocation11 [shape = 'u8[16384]{0}', space=vmem, size = 0x4000, scoped, tag = 'output window, operand 0, single buffered']
    %24 = vsyncpa [#allocation4], 0
    %25 = vsyncpa [#allocation7], 0
    %26 = vsyncpa [#allocation10], 0
    %27 = vsyncpa [#allocation5], 0
    // Predicated region
    $region2: #{attention_block.1} parent=1 // pred_check
      _
    $region3: #{attention_block.1} parent=1 // pred_check_branch
      %29 = sbr.rel (0) target = $region5
    $region4: #{attention_block.1} parent=1 // pred_region
      _
    $region5: #{attention_block.1} parent=1 // pred_fallthru
      _
    // Predicated region
    $region6: #{attention_block.1} parent=1 // pred_check
      _
    $region7: #{attention_block.1} parent=1 // pred_check_branch
      %31 = sbr.rel (0) target = $region9
    $region8: #{attention_block.1} parent=1 // pred_region
      %33 = vsyncadd [#allocation4], 0
      %s34 = sshll.u32 %s1, 4
      %s35 = int_to_ptr.hbm [resolvable:$true] %s34
      %s36 = sshll.u32 [#allocation3], 4
      %s37 = int_to_ptr.vmem [resolvable:$true] %s36
      %42 = dma.hbm_to_vmem [thread:$0]  %s35, 512, %s37, [#allocation4], 128, 128, 8
    $region9: #{attention_block.1} parent=1 // pred_fallthru
      _
    // Predicated region
    $region10: #{attention_block.1} parent=1 // pred_check
      _
    $region11: #{attention_block.1} parent=1 // pred_check_branch
      %44 = sbr.rel (0) target = $region13
    $region12: #{attention_block.1} parent=1 // pred_region
      _
    $region13: #{attention_block.1} parent=1 // pred_fallthru
      _
    // Predicated region
    $region14: #{attention_block.1} parent=1 // pred_check
      _
    $region15: #{attention_block.1} parent=1 // pred_check_branch
      %46 = sbr.rel (0) target = $region17
    $region16: #{attention_block.1} parent=1 // pred_region
      _
    $region17: #{attention_block.1} parent=1 // pred_fallthru
      _
    // Predicated region
    $region18: #{attention_block.1} parent=1 // pred_check
      _
    $region19: #{attention_block.1} parent=1 // pred_check_branch
      %48 = sbr.rel (0) target = $region21
    $region20: #{attention_block.1} parent=1 // pred_region
      _
    $region21: #{attention_block.1} parent=1 // pred_fallthru
      _
    // Predicated region
    $region22: #{attention_block.1} parent=1 // pred_check
      _
    $region23: #{attention_block.1} parent=1 // pred_check_branch
      %50 = sbr.rel (0) target = $region25
    $region24: #{attention_block.1} parent=1 // pred_region
      _
    $region25: #{attention_block.1} parent=1 // pred_fallthru
      _
    // Predicated region
    $region26: #{attention_block.1} parent=1 // pred_check
      _
    $region27: #{attention_block.1} parent=1 // pred_check_branch
      %52 = sbr.rel (0) target = $region29
    $region28: #{attention_block.1} parent=1 // pred_region
      _
    $region29: #{attention_block.1} parent=1 // pred_fallthru
      _
    // Predicated region
    $region30: #{attention_block.1} parent=1 // pred_check
      _
    $region31: #{attention_block.1} parent=1 // pred_check_branch
      %54 = sbr.rel (0) target = $region33
    $region32: #{attention_block.1} parent=1 // pred_region
      %56 = vsyncadd [#allocation7], 0
      %s57 = sshll.u32 %s7, 4
      %s58 = int_to_ptr.hbm [resolvable:$true] %s57
      %s59 = sshll.u32 [#allocation6], 4
      %s60 = int_to_ptr.vmem [resolvable:$true] %s59
      %65 = dma.hbm_to_vmem [thread:$0]  %s58, 512, %s60, [#allocation7], 128, 128, 8
    $region33: #{attention_block.1} parent=1 // pred_fallthru
      _
    // Predicated region
    $region34: #{attention_block.1} parent=1 // pred_check
      _
    $region35: #{attention_block.1} parent=1 // pred_check_branch
      %67 = sbr.rel (0) target = $region37
    $region36: #{attention_block.1} parent=1 // pred_region
      _
    $region37: #{attention_block.1} parent=1 // pred_fallthru
      _
    // Predicated region
    $region38: #{attention_block.1} parent=1 // pred_check
      _
    $region39: #{attention_block.1} parent=1 // pred_check_branch
      %69 = sbr.rel (0) target = $region41
    $region40: #{attention_block.1} parent=1 // pred_region
      %71 = vsyncadd [#allocation7], 0
      %s72 = sshll.u32 %s9, 4
      %s73 = int_to_ptr.hbm [resolvable:$true] %s72
      %s74 = sshll.u32 [#allocation8], 4
      %s75 = int_to_ptr.vmem [resolvable:$true] %s74
      %80 = dma.hbm_to_vmem [thread:$0]  %s73, 512, %s75, [#allocation7], 128, 128, 8
    $region41: #{attention_block.1} parent=1 // pred_fallthru
      _
    // Predicated region
    $region42: #{attention_block.1} parent=1 // pred_check
      _
    $region43: #{attention_block.1} parent=1 // pred_check_branch
      %82 = sbr.rel (0) target = $region45
    $region44: #{attention_block.1} parent=1 // pred_region
      _
    $region45: #{attention_block.1} parent=1 // pred_fallthru
      _
    // Predicated region
    $region46: #{attention_block.1} parent=1 // pred_check
      _
    $region47: #{attention_block.1} parent=1 // pred_check_branch
      %84 = sbr.rel (0) target = $region49
    $region48: #{attention_block.1} parent=1 // pred_region
      _
    $region49: #{attention_block.1} parent=1 // pred_fallthru
      _
    // Predicated region
    $region50: #{attention_block.1} parent=1 // pred_check
      _
    $region51: #{attention_block.1} parent=1 // pred_check_branch
      %86 = sbr.rel (0) target = $region53
    $region52: #{attention_block.1} parent=1 // pred_region
      _
    $region53: #{attention_block.1} parent=1 // pred_fallthru
      _
    // Predicated region
    $region54: #{attention_block.1} parent=1 // pred_check
      _
    $region55: #{attention_block.1} parent=1 // pred_check_branch
      %88 = sbr.rel (0) target = $region57
    $region56: #{attention_block.1} parent=1 // pred_region
      %90 = vsyncadd [#allocation10], 0
      %s91 = sshll.u32 %s13, 4
      %s92 = int_to_ptr.hbm [resolvable:$true] %s91
      %s93 = sshll.u32 [#allocation9], 4
      %s94 = int_to_ptr.vmem [resolvable:$true] %s93
      %99 = dma.hbm_to_vmem [thread:$0]  %s92, 512, %s94, [#allocation10], 128, 128, 8
    $region57: #{attention_block.1} parent=1 // pred_fallthru
      _
    // Predicated region
    $region58: #{attention_block.1} parent=1 // pred_check
      _
    $region59: #{attention_block.1} parent=1 // pred_check_branch
      %101 = sbr.rel (0) target = $region61
    $region60: #{attention_block.1} parent=1 // pred_region
      _
    $region61: #{attention_block.1} parent=1 // pred_fallthru
      _
    // Predicated region
    $region62: #{attention_block.1} parent=1 // pred_check
      _
    $region63: #{attention_block.1} parent=1 // pred_check_branch
      %103 = sbr.rel (0) target = $region65
    $region64: #{attention_block.1} parent=1 // pred_region
      _
    $region65: #{attention_block.1} parent=1 // pred_fallthru
      _
    // Predicated region
    $region66: #{attention_block.1} parent=1 // pred_check
      _
    $region67: #{attention_block.1} parent=1 // pred_check_branch
      %105 = sbr.rel (0) target = $region69
    $region68: #{attention_block.1} parent=1 // pred_region
      _
    $region69: #{attention_block.1} parent=1 // pred_fallthru
      _
    // Predicated region
    $region70: #{attention_block.1} parent=1 // pred_check
      _
    $region71: #{attention_block.1} parent=1 // pred_check_branch
      %107 = sbr.rel (0) target = $region73
    $region72: #{attention_block.1} parent=1 // pred_region
      _
    $region73: #{attention_block.1} parent=1 // pred_fallthru
      _
    // Predicated region
    $region74: #{attention_block.1} parent=1 // pred_check
      _
    $region75: #{attention_block.1} parent=1 // pred_check_branch
      %109 = sbr.rel (0) target = $region77
    $region76: #{attention_block.1} parent=1 // pred_region
      _
    $region77: #{attention_block.1} parent=1 // pred_fallthru
      _
    // Predicated region
    $region78: #{attention_block.1} parent=1 // pred_check
      _
    $region79: #{attention_block.1} parent=1 // pred_check_branch
      %111 = sbr.rel (0) target = $region81
    $region80: #{attention_block.1} parent=1 // pred_region
      %113 = dma.done [#allocation4], 512
    $region81: #{attention_block.1} parent=1 // pred_fallthru
      _
    // Predicated region
    $region82: #{attention_block.1} parent=1 // pred_check
      _
    $region83: #{attention_block.1} parent=1 // pred_check_branch
      %115 = sbr.rel (0) target = $region85
    $region84: #{attention_block.1} parent=1 // pred_region
      %117 = dma.done [#allocation7], 512
    $region85: #{attention_block.1} parent=1 // pred_fallthru
      _
    // Predicated region
    $region86: #{attention_block.1} parent=1 // pred_check
      _
    $region87: #{attention_block.1} parent=1 // pred_check_branch
      %119 = sbr.rel (0) target = $region89
    $region88: #{attention_block.1} parent=1 // pred_region
      %121 = dma.done [#allocation7], 512
    $region89: #{attention_block.1} parent=1 // pred_fallthru
      _
    // Predicated region
    $region90: #{attention_block.1} parent=1 // pred_check
      _
    $region91: #{attention_block.1} parent=1 // pred_check_branch
      %123 = sbr.rel (0) target = $region93
    $region92: #{attention_block.1} parent=1 // pred_region
      %125 = dma.done [#allocation10], 512
    $region93: #{attention_block.1} parent=1 // pred_fallthru
      _
    %v126 = vld [vmem:[%s0] sm:$0xff]
    %v127 = vld [vmem:[%s0 + $0x8] sm:$0xff]
    %v128 = vld [vmem:[%s0 + $0x10] sm:$0xff]
    %v129 = vld [vmem:[%s0 + $0x18] sm:$0xff]
    %v130 = vld [vmem:[#allocation3] sm:$0xff]
    %v131 = vld [vmem:[#allocation3 + $0x8] sm:$0xff]
    %v132 = vld [vmem:[#allocation3 + $0x10] sm:$0xff]
    %v133 = vld [vmem:[#allocation3 + $0x18] sm:$0xff]
    %v134 = vld [vmem:[%s2] sm:$0x1]
    %v135 = vld [vmem:[%s3] sm:$0xff]
    %v136 = vld [vmem:[%s3 + $0x8] sm:$0xff]
    %v137 = vld [vmem:[%s3 + $0x10] sm:$0xff]
    %v138 = vld [vmem:[%s3 + $0x18] sm:$0xff]
    %v139 = vld [vmem:[%s4] sm:$0x1]
    %v141 = vperm.slane %v139, 0
    %vm143 = vcmask 261120
    %v145 = vsel %vm143, %v126, 0
    %v148 = vsel %vm143, %v127, 0
    %v151 = vsel %vm143, %v128, 0
    %v154 = vsel %vm143, %v129, 0
    %156 = vmatpush.msra.mxu0 0.0
    %157 = vmatpush.msra.mxu0 0.0
    %158 = vmatpush.msra.mxu0 0.0
    %159 = vmatpush.msra.mxu0 0.0
    %160 = vmatpush.msra.mxu0 0.0
    %161 = vmatpush.msra.mxu0 0.0
    %162 = vmatpush.msra.mxu0 0.0
    %163 = vmatpush.msra.mxu0 0.0
    %164 = vmatpush.msra.mxu0 0.0
    %165 = vmatpush.msra.mxu0 0.0
    %166 = vmatpush.msra.mxu0 0.0
    %167 = vmatpush.msra.mxu0 0.0
    %168 = vmatpush.msra.mxu0 %v138
    %169 = vmatpush.msra.mxu0 %v137
    %170 = vmatpush.msra.mxu0 %v136
    %171 = vmatpush.msra.mxu0 %v135
    %172 = vmatmul.f32.gmra.mxu0 %v145
    %v173 = vpop.f32.mrf.mxu0
    %v174 = vadd.f32 %v141, %v173
    %175 = vmatmul.f32.gmra.mxu0 %v148
    %v176 = vpop.f32.mrf.mxu0
    %v177 = vadd.f32 %v141, %v176
    %178 = vmatmul.f32.gmra.mxu0 %v151
    %v179 = vpop.f32.mrf.mxu0
    %v180 = vadd.f32 %v141, %v179
    %181 = vmatmul.f32.gmra.mxu0 %v154
    %v182 = vpop.f32.mrf.mxu0
    %v183 = vadd.f32 %v141, %v182
    %184 = vdwg.mxu0
    %v185 = vld [vmem:[%s5] sm:$0xff]
    %v186 = vld [vmem:[%s5 + $0x8] sm:$0xff]
    %v187 = vld [vmem:[%s5 + $0x10] sm:$0xff]
    %v188 = vld [vmem:[%s5 + $0x18] sm:$0xff]
    %v189 = vld [vmem:[%s6] sm:$0x1]
    %v191 = vperm.slane %v189, 0
    %193 = vmatpush.msra.mxu0 0.0
    %194 = vmatpush.msra.mxu0 0.0
    %195 = vmatpush.msra.mxu0 0.0
    %196 = vmatpush.msra.mxu0 0.0
    %197 = vmatpush.msra.mxu0 0.0
    %198 = vmatpush.msra.mxu0 0.0
    %199 = vmatpush.msra.mxu0 0.0
    %200 = vmatpush.msra.mxu0 0.0
    %201 = vmatpush.msra.mxu0 0.0
    %202 = vmatpush.msra.mxu0 0.0
    %203 = vmatpush.msra.mxu0 0.0
    %204 = vmatpush.msra.mxu0 0.0
    %205 = vmatpush.msra.mxu0 %v188
    %206 = vmatpush.msra.mxu0 %v187
    %207 = vmatpush.msra.mxu0 %v186
    %208 = vmatpush.msra.mxu0 %v185
    %209 = vmatmul.f32.gmra.mxu0 %v145
    %v210 = vpop.f32.mrf.mxu0
    %v211 = vadd.f32 %v191, %v210
    %212 = vmatmul.f32.gmra.mxu0 %v148
    %v213 = vpop.f32.mrf.mxu0
    %v214 = vadd.f32 %v191, %v213
    %215 = vmatmul.f32.gmra.mxu0 %v151
    %v216 = vpop.f32.mrf.mxu0
    %v217 = vadd.f32 %v191, %v216
    %218 = vmatmul.f32.gmra.mxu0 %v154
    %v219 = vpop.f32.mrf.mxu0
    %v220 = vadd.f32 %v191, %v219
    %221 = vdwg.mxu0
    %v222 = vld [vmem:[#allocation6] sm:$0xff]
    %v223 = vld [vmem:[#allocation6 + $0x8] sm:$0xff]
    %v224 = vld [vmem:[#allocation6 + $0x10] sm:$0xff]
    %v225 = vld [vmem:[#allocation6 + $0x18] sm:$0xff]
    %v226 = vld [vmem:[%s8] sm:$0x1]
    %v228 = vperm.slane %v226, 0
    %230 = vmatpush.msra.mxu0 0.0
    %231 = vmatpush.msra.mxu0 0.0
    %232 = vmatpush.msra.mxu0 0.0
    %233 = vmatpush.msra.mxu0 0.0
    %234 = vmatpush.msra.mxu0 0.0
    %235 = vmatpush.msra.mxu0 0.0
    %236 = vmatpush.msra.mxu0 0.0
    %237 = vmatpush.msra.mxu0 0.0
    %238 = vmatpush.msra.mxu0 0.0
    %239 = vmatpush.msra.mxu0 0.0
    %240 = vmatpush.msra.mxu0 0.0
    %241 = vmatpush.msra.mxu0 0.0
    %242 = vmatpush.msra.mxu0 %v225
    %243 = vmatpush.msra.mxu0 %v224
    %244 = vmatpush.msra.mxu0 %v223
    %245 = vmatpush.msra.mxu0 %v222
    %246 = vmatmul.f32.gmra.mxu0 %v145
    %v247 = vpop.f32.mrf.mxu0
    %v248 = vadd.f32 %v228, %v247
    %249 = vmatmul.f32.gmra.mxu0 %v148
    %v250 = vpop.f32.mrf.mxu0
    %v251 = vadd.f32 %v228, %v250
    %252 = vmatmul.f32.gmra.mxu0 %v151
    %v253 = vpop.f32.mrf.mxu0
    %v254 = vadd.f32 %v228, %v253
    %255 = vmatmul.f32.gmra.mxu0 %v154
    %v256 = vpop.f32.mrf.mxu0
    %v257 = vadd.f32 %v228, %v256
    %258 = vdwg.mxu0
    %vm259 = vcmp.gt.f32.partialorder %v174, 0.0
    %vm260 = vcmp.gt.f32.partialorder %v177, 0.0
    %vm261 = vcmp.gt.f32.partialorder %v180, 0.0
    %vm262 = vcmp.gt.f32.partialorder %v183, 0.0
    %v263 = vadd.f32 %v174, 1.0
    %v264 = vadd.f32 %v177, 1.0
    %v265 = vadd.f32 %v180, 1.0
    %v266 = vadd.f32 %v183, 1.0
    %v267 = vmul.f32 %v174, 1.442695
    %v268 = vpow.pop %v267
    %v269 = vmul.f32 %v177, 1.442695
    %v270 = vpow.pop %v269
    %v271 = vmul.f32 %v180, 1.442695
    %v272 = vpow.pop %v271
    %v273 = vmul.f32 %v183, 1.442695
    %v274 = vpow.pop %v273
    %v275 = vsel %vm259, %v263, %v268
    %v276 = vsel %vm260, %v264, %v270
    %v277 = vsel %vm261, %v265, %v272
    %v278 = vsel %vm262, %v266, %v274
    %vm279 = vcmp.gt.f32.partialorder %v211, 0.0
    %vm280 = vcmp.gt.f32.partialorder %v214, 0.0
    %vm281 = vcmp.gt.f32.partialorder %v217, 0.0
    %vm282 = vcmp.gt.f32.partialorder %v220, 0.0
    %v283 = vadd.f32 %v211, 1.0
    %v284 = vadd.f32 %v214, 1.0
    %v285 = vadd.f32 %v217, 1.0
    %v286 = vadd.f32 %v220, 1.0
    %v287 = vmul.f32 %v211, 1.442695
    %v288 = vpow.pop %v287
    %v289 = vmul.f32 %v214, 1.442695
    %v290 = vpow.pop %v289
    %v291 = vmul.f32 %v217, 1.442695
    %v292 = vpow.pop %v291
    %v293 = vmul.f32 %v220, 1.442695
    %v294 = vpow.pop %v293
    %v295 = vsel %vm279, %v283, %v288
    %v296 = vsel %vm280, %v284, %v290
    %v297 = vsel %vm281, %v285, %v292
    %v298 = vsel %vm282, %v286, %v294
    %299 = vxpose.xlu0.b32.start [1/16] %v295, 128
    %300 = vxpose.xlu0.b32.cont [2/16] %v296, 128
    %301 = vxpose.xlu0.b32.cont [3/16] 0.0, 128
    %302 = vxpose.xlu0.b32.cont [4/16] 0.0, 128
    %303 = vxpose.xlu0.b32.cont [5/16] 0.0, 128
    %304 = vxpose.xlu0.b32.cont [6/16] 0.0, 128
    %305 = vxpose.xlu0.b32.cont [7/16] 0.0, 128
    %306 = vxpose.xlu0.b32.cont [8/16] 0.0, 128
    %307 = vxpose.xlu0.b32.cont [9/16] 0.0, 128
    %308 = vxpose.xlu0.b32.cont [10/16] 0.0, 128
    %309 = vxpose.xlu0.b32.cont [11/16] 0.0, 128
    %310 = vxpose.xlu0.b32.cont [12/16] 0.0, 128
    %311 = vxpose.xlu0.b32.cont [13/16] 0.0, 128
    %312 = vxpose.xlu0.b32.cont [14/16] 0.0, 128
    %313 = vxpose.xlu0.b32.cont [15/16] 0.0, 128
    %314 = vxpose.xlu0.b32.end [16/16] 0.0, 128
    %v315 = vpop.trf.xlu0
    %v316 = vpop.trf.xlu0
    %v317 = vpop.trf.xlu0
    %v318 = vpop.trf.xlu0
    %v319 = vpop.trf.xlu0
    %v320 = vpop.trf.xlu0
    %v321 = vpop.trf.xlu0
    %v322 = vpop.trf.xlu0
    %v323 = vpop.trf.xlu0
    %v324 = vpop.trf.xlu0
    %v325 = vpop.trf.xlu0
    %v326 = vpop.trf.xlu0
    %v327 = vpop.trf.xlu0
    %v328 = vpop.trf.xlu0
    %v329 = vpop.trf.xlu0
    %v330 = vpop.trf.xlu0
    %vm331 = vcmask 130048
    %v333 = vsel %vm331, %v315, 0
    %v336 = vsel %vm331, %v316, 0
    %v339 = vsel %vm331, %v317, 0
    %v342 = vsel %vm331, %v318, 0
    %344 = vmatpush.msra.mxu0 0.0
    %345 = vmatpush.msra.mxu0 0.0
    %346 = vmatpush.msra.mxu0 0.0
    %347 = vmatpush.msra.mxu0 0.0
    %348 = vmatpush.msra.mxu0 0.0
    %349 = vmatpush.msra.mxu0 0.0
    %350 = vmatpush.msra.mxu0 0.0
    %351 = vmatpush.msra.mxu0 0.0
    %352 = vmatpush.msra.mxu0 0.0
    %353 = vmatpush.msra.mxu0 0.0
    %354 = vmatpush.msra.mxu0 0.0
    %355 = vmatpush.msra.mxu0 0.0
    %356 = vmatpush.msra.mxu0 0.0
    %357 = vmatpush.msra.mxu0 0.0
    %358 = vmatpush.msra.mxu0 %v251
    %359 = vmatpush.msra.mxu0 %v248
    %360 = vmatmul.f32.gmra.mxu0 %v333
    %v361 = vpop.f32.mrf.mxu0
    %v362 = vadd.f32 0.0, %v361
    %363 = vmatmul.f32.gmra.mxu0 %v336
    %v364 = vpop.f32.mrf.mxu0
    %v365 = vadd.f32 0.0, %v364
    %366 = vmatmul.f32.gmra.mxu0 %v339
    %v367 = vpop.f32.mrf.mxu0
    %v368 = vadd.f32 0.0, %v367
    %369 = vmatmul.f32.gmra.mxu0 %v342
    %v370 = vpop.f32.mrf.mxu0
    %v371 = vadd.f32 0.0, %v370
    %372 = vdwg.mxu0
    %v373 = vmul.f32 %v362, %v130
    %v374 = vmul.f32 %v365, %v131
    %v375 = vmul.f32 %v368, %v132
    %v376 = vmul.f32 %v371, %v133
    %v378 = vsel %vm143, %v275, 0
    %v381 = vsel %vm143, %v276, 0
    %383 = vmatpush.msra.mxu0 0.0
    %384 = vmatpush.msra.mxu0 0.0
    %385 = vmatpush.msra.mxu0 0.0
    %386 = vmatpush.msra.mxu0 0.0
    %387 = vmatpush.msra.mxu0 0.0
    %388 = vmatpush.msra.mxu0 0.0
    %389 = vmatpush.msra.mxu0 0.0
    %390 = vmatpush.msra.mxu0 0.0
    %391 = vmatpush.msra.mxu0 0.0
    %392 = vmatpush.msra.mxu0 0.0
    %393 = vmatpush.msra.mxu0 0.0
    %394 = vmatpush.msra.mxu0 0.0
    %395 = vmatpush.msra.mxu0 %v376
    %396 = vmatpush.msra.mxu0 %v375
    %397 = vmatpush.msra.mxu0 %v374
    %398 = vmatpush.msra.mxu0 %v373
    %399 = vmatmul.f32.gmra.mxu0 %v378
    %v400 = vpop.f32.mrf.mxu0
    %v401 = vadd.f32 0.0, %v400
    %402 = vmatmul.f32.gmra.mxu0 %v381
    %v403 = vpop.f32.mrf.mxu0
    %v404 = vadd.f32 0.0, %v403
    %405 = vdwg.mxu0
    %v407 = vsel %vm331, %v134, 0
    %409 = vmatpush.msra.mxu0 0.0
    %410 = vmatpush.msra.mxu0 0.0
    %411 = vmatpush.msra.mxu0 0.0
    %412 = vmatpush.msra.mxu0 0.0
    %413 = vmatpush.msra.mxu0 0.0
    %414 = vmatpush.msra.mxu0 0.0
    %415 = vmatpush.msra.mxu0 0.0
    %416 = vmatpush.msra.mxu0 0.0
    %417 = vmatpush.msra.mxu0 0.0
    %418 = vmatpush.msra.mxu0 0.0
    %419 = vmatpush.msra.mxu0 0.0
    %420 = vmatpush.msra.mxu0 0.0
    %421 = vmatpush.msra.mxu0 0.0
    %422 = vmatpush.msra.mxu0 0.0
    %423 = vmatpush.msra.mxu0 %v296
    %424 = vmatpush.msra.mxu0 %v295
    %425 = vmatmul.f32.gmra.mxu0 %v407
    %v426 = vpop.f32.mrf.mxu0
    %v427 = vadd.f32 0.0, %v426
    %428 = vdwg.mxu0
    %v429 = vperm.slane %v427, 0
    %v430 = vmul.f32 %v275, %v429
    %v431 = vmul.f32 %v276, %v429
    %v433 = vsel %vm143, %v430, 0
    %v436 = vsel %vm143, %v431, 0
    %438 = vmatpush.msra.mxu0 0.0
    %439 = vmatpush.msra.mxu0 0.0
    %440 = vmatpush.msra.mxu0 0.0
    %441 = vmatpush.msra.mxu0 0.0
    %442 = vmatpush.msra.mxu0 0.0
    %443 = vmatpush.msra.mxu0 0.0
    %444 = vmatpush.msra.mxu0 0.0
    %445 = vmatpush.msra.mxu0 0.0
    %446 = vmatpush.msra.mxu0 0.0
    %447 = vmatpush.msra.mxu0 0.0
    %448 = vmatpush.msra.mxu0 0.0
    %449 = vmatpush.msra.mxu0 0.0
    %450 = vmatpush.msra.mxu0 %v133
    %451 = vmatpush.msra.mxu0 %v132
    %452 = vmatpush.msra.mxu0 %v131
    %453 = vmatpush.msra.mxu0 %v130
    %454 = vmatmul.f32.gmra.mxu0 %v433
    %v455 = vpop.f32.mrf.mxu0
    %v456 = vadd.f32 1e-06, %v455
    %457 = vmatmul.f32.gmra.mxu0 %v436
    %v458 = vpop.f32.mrf.mxu0
    %v459 = vadd.f32 1e-06, %v458
    %460 = vdwg.mxu0
    %v461 = vrcp.pop %v456
    %v462 = vmul.f32 %v456, %v461
    %v463 = vsub.f32 1.0, %v462
    %v464 = vmul.f32 %v461, %v463
    %v465 = vadd.f32 %v461, %v464
    %vm466 = vweird.f32 %v456
    %vm467 = vweird.f32 %v461
    %vm468 = vmor %vm466, %vm467
    %v469 = vsel %vm468, %v461, %v465
    %v470 = vand.u32 2147483647, %v456
    %vm471 = vcmp.eq.f32.partialorder %v470, 8.507059e+37
    %v472 = vand.u32 %v456, 2147483648
    %v473 = vor.u32 1.1754944e-38, %v472
    %v474 = vsel %vm471, %v473, %v469
    %v475 = vmul.f32 1.0, %v474
    %v476 = vrcp.pop %v459
    %v477 = vmul.f32 %v459, %v476
    %v478 = vsub.f32 1.0, %v477
    %v479 = vmul.f32 %v476, %v478
    %v480 = vadd.f32 %v476, %v479
    %vm481 = vweird.f32 %v459
    %vm482 = vweird.f32 %v476
    %vm483 = vmor %vm481, %vm482
    %v484 = vsel %vm483, %v476, %v480
    %v485 = vand.u32 2147483647, %v459
    %vm486 = vcmp.eq.f32.partialorder %v485, 8.507059e+37
    %v487 = vand.u32 %v459, 2147483648
    %v488 = vor.u32 1.1754944e-38, %v487
    %v489 = vsel %vm486, %v488, %v484
    %v490 = vmul.f32 1.0, %v489
    %v491 = vmul.f32 %v401, %v475
    %v492 = vmul.f32 %v404, %v490
    %493 = vst.msk [vmem:[#allocation2] sm:$0xff] %vm143, %v491
    %494 = vst.msk [vmem:[#allocation2 + $0x8] sm:$0xff] %vm143, %v492
    %495 = vxpose.xlu0.b32.start [1/16] %v297, 128
    %496 = vxpose.xlu0.b32.cont [2/16] %v298, 128
    %497 = vxpose.xlu0.b32.cont [3/16] 0.0, 128
    %498 = vxpose.xlu0.b32.cont [4/16] 0.0, 128
    %499 = vxpose.xlu0.b32.cont [5/16] 0.0, 128
    %500 = vxpose.xlu0.b32.cont [6/16] 0.0, 128
    %501 = vxpose.xlu0.b32.cont [7/16] 0.0, 128
    %502 = vxpose.xlu0.b32.cont [8/16] 0.0, 128
    %503 = vxpose.xlu0.b32.cont [9/16] 0.0, 128
    %504 = vxpose.xlu0.b32.cont [10/16] 0.0, 128
    %505 = vxpose.xlu0.b32.cont [11/16] 0.0, 128
    %506 = vxpose.xlu0.b32.cont [12/16] 0.0, 128
    %507 = vxpose.xlu0.b32.cont [13/16] 0.0, 128
    %508 = vxpose.xlu0.b32.cont [14/16] 0.0, 128
    %509 = vxpose.xlu0.b32.cont [15/16] 0.0, 128
    %510 = vxpose.xlu0.b32.end [16/16] 0.0, 128
    %v511 = vpop.trf.xlu0
    %v512 = vpop.trf.xlu0
    %v513 = vpop.trf.xlu0
    %v514 = vpop.trf.xlu0
    %v515 = vpop.trf.xlu0
    %v516 = vpop.trf.xlu0
    %v517 = vpop.trf.xlu0
    %v518 = vpop.trf.xlu0
    %v519 = vpop.trf.xlu0
    %v520 = vpop.trf.xlu0
    %v521 = vpop.trf.xlu0
    %v522 = vpop.trf.xlu0
    %v523 = vpop.trf.xlu0
    %v524 = vpop.trf.xlu0
    %v525 = vpop.trf.xlu0
    %v526 = vpop.trf.xlu0
    %v528 = vsel %vm331, %v511, 0
    %v531 = vsel %vm331, %v512, 0
    %v534 = vsel %vm331, %v513, 0
    %v537 = vsel %vm331, %v514, 0
    %539 = vmatpush.msra.mxu0 0.0
    %540 = vmatpush.msra.mxu0 0.0
    %541 = vmatpush.msra.mxu0 0.0
    %542 = vmatpush.msra.mxu0 0.0
    %543 = vmatpush.msra.mxu0 0.0
    %544 = vmatpush.msra.mxu0 0.0
    %545 = vmatpush.msra.mxu0 0.0
    %546 = vmatpush.msra.mxu0 0.0
    %547 = vmatpush.msra.mxu0 0.0
    %548 = vmatpush.msra.mxu0 0.0
    %549 = vmatpush.msra.mxu0 0.0
    %550 = vmatpush.msra.mxu0 0.0
    %551 = vmatpush.msra.mxu0 0.0
    %552 = vmatpush.msra.mxu0 0.0
    %553 = vmatpush.msra.mxu0 %v257
    %554 = vmatpush.msra.mxu0 %v254
    %555 = vmatmul.f32.gmra.mxu0 %v528
    %v556 = vpop.f32.mrf.mxu0
    %v557 = vadd.f32 0.0, %v556
    %558 = vmatmul.f32.gmra.mxu0 %v531
    %v559 = vpop.f32.mrf.mxu0
    %v560 = vadd.f32 0.0, %v559
    %561 = vmatmul.f32.gmra.mxu0 %v534
    %v562 = vpop.f32.mrf.mxu0
    %v563 = vadd.f32 0.0, %v562
    %564 = vmatmul.f32.gmra.mxu0 %v537
    %v565 = vpop.f32.mrf.mxu0
    %v566 = vadd.f32 0.0, %v565
    %567 = vdwg.mxu0
    %v568 = vmul.f32 %v557, %v130
    %v569 = vmul.f32 %v560, %v131
    %v570 = vmul.f32 %v563, %v132
    %v571 = vmul.f32 %v566, %v133
    %v573 = vsel %vm143, %v277, 0
    %v576 = vsel %vm143, %v278, 0
    %578 = vmatpush.msra.mxu0 0.0
    %579 = vmatpush.msra.mxu0 0.0
    %580 = vmatpush.msra.mxu0 0.0
    %581 = vmatpush.msra.mxu0 0.0
    %582 = vmatpush.msra.mxu0 0.0
    %583 = vmatpush.msra.mxu0 0.0
    %584 = vmatpush.msra.mxu0 0.0
    %585 = vmatpush.msra.mxu0 0.0
    %586 = vmatpush.msra.mxu0 0.0
    %587 = vmatpush.msra.mxu0 0.0
    %588 = vmatpush.msra.mxu0 0.0
    %589 = vmatpush.msra.mxu0 0.0
    %590 = vmatpush.msra.mxu0 %v571
    %591 = vmatpush.msra.mxu0 %v570
    %592 = vmatpush.msra.mxu0 %v569
    %593 = vmatpush.msra.mxu0 %v568
    %594 = vmatmul.f32.gmra.mxu0 %v573
    %v595 = vpop.f32.mrf.mxu0
    %v596 = vadd.f32 0.0, %v595
    %597 = vmatmul.f32.gmra.mxu0 %v576
    %v598 = vpop.f32.mrf.mxu0
    %v599 = vadd.f32 0.0, %v598
    %600 = vdwg.mxu0
    %601 = vmatpush.msra.mxu0 0.0
    %602 = vmatpush.msra.mxu0 0.0
    %603 = vmatpush.msra.mxu0 0.0
    %604 = vmatpush.msra.mxu0 0.0
    %605 = vmatpush.msra.mxu0 0.0
    %606 = vmatpush.msra.mxu0 0.0
    %607 = vmatpush.msra.mxu0 0.0
    %608 = vmatpush.msra.mxu0 0.0
    %609 = vmatpush.msra.mxu0 0.0
    %610 = vmatpush.msra.mxu0 0.0
    %611 = vmatpush.msra.mxu0 0.0
    %612 = vmatpush.msra.mxu0 0.0
    %613 = vmatpush.msra.mxu0 0.0
    %614 = vmatpush.msra.mxu0 0.0
    %615 = vmatpush.msra.mxu0 %v298
    %616 = vmatpush.msra.mxu0 %v297
    %617 = vmatmul.f32.gmra.mxu0 %v407
    %v618 = vpop.f32.mrf.mxu0
    %v619 = vadd.f32 0.0, %v618
    %620 = vdwg.mxu0
    %v621 = vperm.slane %v619, 0
    %v622 = vmul.f32 %v277, %v621
    %v623 = vmul.f32 %v278, %v621
    %v625 = vsel %vm143, %v622, 0
    %v628 = vsel %vm143, %v623, 0
    %630 = vmatpush.msra.mxu0 0.0
    %631 = vmatpush.msra.mxu0 0.0
    %632 = vmatpush.msra.mxu0 0.0
    %633 = vmatpush.msra.mxu0 0.0
    %634 = vmatpush.msra.mxu0 0.0
    %635 = vmatpush.msra.mxu0 0.0
    %636 = vmatpush.msra.mxu0 0.0
    %637 = vmatpush.msra.mxu0 0.0
    %638 = vmatpush.msra.mxu0 0.0
    %639 = vmatpush.msra.mxu0 0.0
    %640 = vmatpush.msra.mxu0 0.0
    %641 = vmatpush.msra.mxu0 0.0
    %642 = vmatpush.msra.mxu0 %v133
    %643 = vmatpush.msra.mxu0 %v132
    %644 = vmatpush.msra.mxu0 %v131
    %645 = vmatpush.msra.mxu0 %v130
    %646 = vmatmul.f32.gmra.mxu0 %v625
    %v647 = vpop.f32.mrf.mxu0
    %v648 = vadd.f32 1e-06, %v647
    %649 = vmatmul.f32.gmra.mxu0 %v628
    %v650 = vpop.f32.mrf.mxu0
    %v651 = vadd.f32 1e-06, %v650
    %652 = vdwg.mxu0
    %v653 = vrcp.pop %v648
    %v654 = vmul.f32 %v648, %v653
    %v655 = vsub.f32 1.0, %v654
    %v656 = vmul.f32 %v653, %v655
    %v657 = vadd.f32 %v653, %v656
    %vm658 = vweird.f32 %v648
    %vm659 = vweird.f32 %v653
    %vm660 = vmor %vm658, %vm659
    %v661 = vsel %vm660, %v653, %v657
    %v662 = vand.u32 2147483647, %v648
    %vm663 = vcmp.eq.f32.partialorder %v662, 8.507059e+37
    %v664 = vand.u32 %v648, 2147483648
    %v665 = vor.u32 1.1754944e-38, %v664
    %v666 = vsel %vm663, %v665, %v661
    %v667 = vmul.f32 1.0, %v666
    %v668 = vrcp.pop %v651
    %v669 = vmul.f32 %v651, %v668
    %v670 = vsub.f32 1.0, %v669
    %v671 = vmul.f32 %v668, %v670
    %v672 = vadd.f32 %v668, %v671
    %vm673 = vweird.f32 %v651
    %vm674 = vweird.f32 %v668
    %vm675 = vmor %vm673, %vm674
    %v676 = vsel %vm675, %v668, %v672
    %v677 = vand.u32 2147483647, %v651
    %vm678 = vcmp.eq.f32.partialorder %v677, 8.507059e+37
    %v679 = vand.u32 %v651, 2147483648
    %v680 = vor.u32 1.1754944e-38, %v679
    %v681 = vsel %vm678, %v680, %v676
    %v682 = vmul.f32 1.0, %v681
    %v683 = vmul.f32 %v596, %v667
    %v684 = vmul.f32 %v599, %v682
    %685 = vst.msk [vmem:[#allocation2 + $0x10] sm:$0xff] %vm143, %v683
    %686 = vst.msk [vmem:[#allocation2 + $0x18] sm:$0xff] %vm143, %v684
    %v687 = vld [vmem:[#allocation2] sm:$0xff]
    %v688 = vld [vmem:[#allocation2 + $0x8] sm:$0xff]
    %v689 = vld [vmem:[#allocation2 + $0x10] sm:$0xff]
    %v690 = vld [vmem:[#allocation2 + $0x18] sm:$0xff]
    %v691 = vld [vmem:[#allocation8] sm:$0xff]
    %v692 = vld [vmem:[#allocation8 + $0x8] sm:$0xff]
    %v693 = vld [vmem:[#allocation8 + $0x10] sm:$0xff]
    %v694 = vld [vmem:[#allocation8 + $0x18] sm:$0xff]
    %v695 = vld [vmem:[%s10] sm:$0x1]
    %v697 = vperm.slane %v695, 0
    %v700 = vsel %vm143, %v687, 0
    %v703 = vsel %vm143, %v688, 0
    %v706 = vsel %vm143, %v689, 0
    %v709 = vsel %vm143, %v690, 0
    %711 = vmatpush.msra.mxu0 0.0
    %712 = vmatpush.msra.mxu0 0.0
    %713 = vmatpush.msra.mxu0 0.0
    %714 = vmatpush.msra.mxu0 0.0
    %715 = vmatpush.msra.mxu0 0.0
    %716 = vmatpush.msra.mxu0 0.0
    %717 = vmatpush.msra.mxu0 0.0
    %718 = vmatpush.msra.mxu0 0.0
    %719 = vmatpush.msra.mxu0 0.0
    %720 = vmatpush.msra.mxu0 0.0
    %721 = vmatpush.msra.mxu0 0.0
    %722 = vmatpush.msra.mxu0 0.0
    %723 = vmatpush.msra.mxu0 %v694
    %724 = vmatpush.msra.mxu0 %v693
    %725 = vmatpush.msra.mxu0 %v692
    %726 = vmatpush.msra.mxu0 %v691
    %727 = vmatmul.f32.gmra.mxu0 %v700
    %v728 = vpop.f32.mrf.mxu0
    %v729 = vadd.f32 %v697, %v728
    %730 = vmatmul.f32.gmra.mxu0 %v703
    %v731 = vpop.f32.mrf.mxu0
    %v732 = vadd.f32 %v697, %v731
    %733 = vmatmul.f32.gmra.mxu0 %v706
    %v734 = vpop.f32.mrf.mxu0
    %v735 = vadd.f32 %v697, %v734
    %736 = vmatmul.f32.gmra.mxu0 %v709
    %v737 = vpop.f32.mrf.mxu0
    %v738 = vadd.f32 %v697, %v737
    %739 = vdwg.mxu0
    %v740 = vadd.f32 %v126, %v729
    %v741 = vadd.f32 %v127, %v732
    %v742 = vadd.f32 %v128, %v735
    %v743 = vadd.f32 %v129, %v738
    %v744 = vld [vmem:[%s11] sm:$0x1]
    %v745 = vld [vmem:[%s12] sm:$0x1]
    %v746 = vsel %vm143, %v740, 0.0
    %747 = vadd.xlane.f32.xlu0 %v746
    %v748 = vpop.xlane.xlu0 %747
    %v749 = vsel %vm143, %v741, 0.0
    %750 = vadd.xlane.f32.xlu0 %v749
    %v751 = vpop.xlane.xlu0 %750
    %v752 = vsel %vm143, %v742, 0.0
    %753 = vadd.xlane.f32.xlu0 %v752
    %v754 = vpop.xlane.xlu0 %753
    %v755 = vsel %vm143, %v743, 0.0
    %756 = vadd.xlane.f32.xlu0 %v755
    %v757 = vpop.xlane.xlu0 %756
    %v758 = vrcp.pop 32.0
    %v759 = vmul.f32 32.0, %v758
    %v760 = vsub.f32 1.0, %v759
    %v761 = vmul.f32 %v758, %v760
    %v762 = vadd.f32 %v758, %v761
    %vm763 = vweird.f32 %v758
    %v764 = vsel %vm763, %v758, %v762
    %v765 = vmul.f32 %v748, %v764
    %v766 = vmul.f32 %v751, %v764
    %v767 = vmul.f32 %v754, %v764
    %v768 = vmul.f32 %v757, %v764
    %v769 = vsub.f32 %v740, %v765
    %v770 = vsub.f32 %v741, %v766
    %v771 = vsub.f32 %v742, %v767
    %v772 = vsub.f32 %v743, %v768
    %v773 = vmul.f32 %v769, %v769
    %v774 = vmul.f32 %v770, %v770
    %v775 = vmul.f32 %v771, %v771
    %v776 = vmul.f32 %v772, %v772
    %v777 = vsel %vm143, %v773, 0.0
    %778 = vadd.xlane.f32.xlu0 %v777
    %v779 = vpop.xlane.xlu0 %778
    %v780 = vsel %vm143, %v774, 0.0
    %781 = vadd.xlane.f32.xlu0 %v780
    %v782 = vpop.xlane.xlu0 %781
    %v783 = vsel %vm143, %v775, 0.0
    %784 = vadd.xlane.f32.xlu0 %v783
    %v785 = vpop.xlane.xlu0 %784
    %v786 = vsel %vm143, %v776, 0.0
    %787 = vadd.xlane.f32.xlu0 %v786
    %v788 = vpop.xlane.xlu0 %787
    %v789 = vmul.f32 %v779, %v764
    %v790 = vmul.f32 %v782, %v764
    %v791 = vmul.f32 %v785, %v764
    %v792 = vmul.f32 %v788, %v764
    %v793 = vadd.f32 %v789, 1e-05
    %v794 = vadd.f32 %v790, 1e-05
    %v795 = vadd.f32 %v791, 1e-05
    %v796 = vadd.f32 %v792, 1e-05
    %v797 = vrsqrt.pop %v793
    %v798 = vmul.f32 %v797, %v793
    %v799 = vmul.f32 %v798, %v797
    %v800 = vmul.f32 0.5, %v799
    %v801 = vsub.f32 1.5, %v800
    %v802 = vmul.f32 %v797, %v801
    %vm803 = vweird.f32 %v793
    %vm804 = vweird.f32 %v797
    %vm805 = vmor %vm803, %vm804
    %v806 = vsel %vm805, %v797, %v802
    %v807 = vrsqrt.pop %v794
    %v808 = vmul.f32 %v807, %v794
    %v809 = vmul.f32 %v808, %v807
    %v810 = vmul.f32 0.5, %v809
    %v811 = vsub.f32 1.5, %v810
    %v812 = vmul.f32 %v807, %v811
    %vm813 = vweird.f32 %v794
    %vm814 = vweird.f32 %v807
    %vm815 = vmor %vm813, %vm814
    %v816 = vsel %vm815, %v807, %v812
    %v817 = vrsqrt.pop %v795
    %v818 = vmul.f32 %v817, %v795
    %v819 = vmul.f32 %v818, %v817
    %v820 = vmul.f32 0.5, %v819
    %v821 = vsub.f32 1.5, %v820
    %v822 = vmul.f32 %v817, %v821
    %vm823 = vweird.f32 %v795
    %vm824 = vweird.f32 %v817
    %vm825 = vmor %vm823, %vm824
    %v826 = vsel %vm825, %v817, %v822
    %v827 = vrsqrt.pop %v796
    %v828 = vmul.f32 %v827, %v796
    %v829 = vmul.f32 %v828, %v827
    %v830 = vmul.f32 0.5, %v829
    %v831 = vsub.f32 1.5, %v830
    %v832 = vmul.f32 %v827, %v831
    %vm833 = vweird.f32 %v796
    %vm834 = vweird.f32 %v827
    %vm835 = vmor %vm833, %vm834
    %v836 = vsel %vm835, %v827, %v832
    %v837 = vmul.f32 %v769, %v806
    %v838 = vmul.f32 %v770, %v816
    %v839 = vmul.f32 %v771, %v826
    %v840 = vmul.f32 %v772, %v836
    %v842 = vperm.slane %v744, 0
    %v844 = vmul.f32 %v837, %v842
    %v845 = vmul.f32 %v838, %v842
    %v846 = vmul.f32 %v839, %v842
    %v847 = vmul.f32 %v840, %v842
    %v849 = vperm.slane %v745, 0
    %v851 = vadd.f32 %v844, %v849
    %v852 = vadd.f32 %v845, %v849
    %v853 = vadd.f32 %v846, %v849
    %v854 = vadd.f32 %v847, %v849
    %v855 = vld [vmem:[#allocation9] sm:$0xff]
    %v856 = vld [vmem:[#allocation9 + $0x8] sm:$0xff]
    %v857 = vld [vmem:[#allocation9 + $0x10] sm:$0xff]
    %v858 = vld [vmem:[#allocation9 + $0x18] sm:$0xff]
    %v859 = vld [vmem:[%s14] sm:$0x1]
    %v861 = vperm.slane %v859, 0
    %v864 = vsel %vm143, %v851, 0
    %v867 = vsel %vm143, %v852, 0
    %v870 = vsel %vm143, %v853, 0
    %v873 = vsel %vm143, %v854, 0
    %875 = vmatpush.msra.mxu0 0.0
    %876 = vmatpush.msra.mxu0 0.0
    %877 = vmatpush.msra.mxu0 0.0
    %878 = vmatpush.msra.mxu0 0.0
    %879 = vmatpush.msra.mxu0 0.0
    %880 = vmatpush.msra.mxu0 0.0
    %881 = vmatpush.msra.mxu0 0.0
    %882 = vmatpush.msra.mxu0 0.0
    %883 = vmatpush.msra.mxu0 0.0
    %884 = vmatpush.msra.mxu0 0.0
    %885 = vmatpush.msra.mxu0 0.0
    %886 = vmatpush.msra.mxu0 0.0
    %887 = vmatpush.msra.mxu0 %v858
    %888 = vmatpush.msra.mxu0 %v857
    %889 = vmatpush.msra.mxu0 %v856
    %890 = vmatpush.msra.mxu0 %v855
    %891 = vmatmul.f32.gmra.mxu0 %v864
    %v892 = vpop.f32.mrf.mxu0
    %v893 = vadd.f32 %v861, %v892
    %894 = vmatmul.f32.gmra.mxu0 %v867
    %v895 = vpop.f32.mrf.mxu0
    %v896 = vadd.f32 %v861, %v895
    %897 = vmatmul.f32.gmra.mxu0 %v870
    %v898 = vpop.f32.mrf.mxu0
    %v899 = vadd.f32 %v861, %v898
    %900 = vmatmul.f32.gmra.mxu0 %v873
    %v901 = vpop.f32.mrf.mxu0
    %v902 = vadd.f32 %v861, %v901
    %903 = vdwg.mxu0
    %v904 = vmax.f32 %v893, 0.0
    %v905 = vmax.f32 %v896, 0.0
    %v906 = vmax.f32 %v899, 0.0
    %v907 = vmax.f32 %v902, 0.0
    %v908 = vld [vmem:[%s15] sm:$0xff]
    %v909 = vld [vmem:[%s15 + $0x8] sm:$0xff]
    %v910 = vld [vmem:[%s15 + $0x10] sm:$0xff]
    %v911 = vld [vmem:[%s15 + $0x18] sm:$0xff]
    %v912 = vld [vmem:[%s15 + $0x20] sm:$0xff]
    %v913 = vld [vmem:[%s15 + $0x28] sm:$0xff]
    %v914 = vld [vmem:[%s15 + $0x30] sm:$0xff]
    %v915 = vld [vmem:[%s15 + $0x38] sm:$0xff]
    %v916 = vld [vmem:[%s16] sm:$0x1]
    %v918 = vperm.slane %v916, 0
    %vm920 = vcmask 523264
    %v922 = vsel %vm920, %v904, 0
    %v925 = vsel %vm920, %v905, 0
    %v928 = vsel %vm920, %v906, 0
    %v931 = vsel %vm920, %v907, 0
    %933 = vmatpush.msra.mxu0 0.0
    %934 = vmatpush.msra.mxu0 0.0
    %935 = vmatpush.msra.mxu0 0.0
    %936 = vmatpush.msra.mxu0 0.0
    %937 = vmatpush.msra.mxu0 0.0
    %938 = vmatpush.msra.mxu0 0.0
    %939 = vmatpush.msra.mxu0 0.0
    %940 = vmatpush.msra.mxu0 0.0
    %941 = vmatpush.msra.mxu0 %v915
    %942 = vmatpush.msra.mxu0 %v914
    %943 = vmatpush.msra.mxu0 %v913
    %944 = vmatpush.msra.mxu0 %v912
    %945 = vmatpush.msra.mxu0 %v911
    %946 = vmatpush.msra.mxu0 %v910
    %947 = vmatpush.msra.mxu0 %v909
    %948 = vmatpush.msra.mxu0 %v908
    %949 = vmatmul.f32.gmra.mxu0 %v922
    %v950 = vpop.f32.mrf.mxu0
    %v951 = vadd.f32 %v918, %v950
    %952 = vmatmul.f32.gmra.mxu0 %v925
    %v953 = vpop.f32.mrf.mxu0
    %v954 = vadd.f32 %v918, %v953
    %955 = vmatmul.f32.gmra.mxu0 %v928
    %v956 = vpop.f32.mrf.mxu0
    %v957 = vadd.f32 %v918, %v956
    %958 = vmatmul.f32.gmra.mxu0 %v931
    %v959 = vpop.f32.mrf.mxu0
    %v960 = vadd.f32 %v918, %v959
    %961 = vdwg.mxu0
    %v962 = vadd.f32 %v851, %v951
    %v963 = vadd.f32 %v852, %v954
    %v964 = vadd.f32 %v853, %v957
    %v965 = vadd.f32 %v854, %v960
    %v966 = vld [vmem:[%s17] sm:$0x1]
    %v967 = vld [vmem:[%s18] sm:$0x1]
    %v968 = vsel %vm143, %v962, 0.0
    %969 = vadd.xlane.f32.xlu0 %v968
    %v970 = vpop.xlane.xlu0 %969
    %v971 = vsel %vm143, %v963, 0.0
    %972 = vadd.xlane.f32.xlu0 %v971
    %v973 = vpop.xlane.xlu0 %972
    %v974 = vsel %vm143, %v964, 0.0
    %975 = vadd.xlane.f32.xlu0 %v974
    %v976 = vpop.xlane.xlu0 %975
    %v977 = vsel %vm143, %v965, 0.0
    %978 = vadd.xlane.f32.xlu0 %v977
    %v979 = vpop.xlane.xlu0 %978
    %v980 = vmul.f32 %v970, %v764
    %v981 = vmul.f32 %v973, %v764
    %v982 = vmul.f32 %v976, %v764
    %v983 = vmul.f32 %v979, %v764
    %v984 = vsub.f32 %v962, %v980
    %v985 = vsub.f32 %v963, %v981
    %v986 = vsub.f32 %v964, %v982
    %v987 = vsub.f32 %v965, %v983
    %v988 = vmul.f32 %v984, %v984
    %v989 = vmul.f32 %v985, %v985
    %v990 = vmul.f32 %v986, %v986
    %v991 = vmul.f32 %v987, %v987
    %v992 = vsel %vm143, %v988, 0.0
    %993 = vadd.xlane.f32.xlu0 %v992
    %v994 = vpop.xlane.xlu0 %993
    %v995 = vsel %vm143, %v989, 0.0
    %996 = vadd.xlane.f32.xlu0 %v995
    %v997 = vpop.xlane.xlu0 %996
    %v998 = vsel %vm143, %v990, 0.0
    %999 = vadd.xlane.f32.xlu0 %v998
    %v1000 = vpop.xlane.xlu0 %999
    %v1001 = vsel %vm143, %v991, 0.0
    %1002 = vadd.xlane.f32.xlu0 %v1001
    %v1003 = vpop.xlane.xlu0 %1002
    %v1004 = vmul.f32 %v994, %v764
    %v1005 = vmul.f32 %v997, %v764
    %v1006 = vmul.f32 %v1000, %v764
    %v1007 = vmul.f32 %v1003, %v764
    %v1008 = vadd.f32 %v1004, 1e-05
    %v1009 = vadd.f32 %v1005, 1e-05
    %v1010 = vadd.f32 %v1006, 1e-05
    %v1011 = vadd.f32 %v1007, 1e-05
    %v1012 = vrsqrt.pop %v1008
    %v1013 = vmul.f32 %v1012, %v1008
    %v1014 = vmul.f32 %v1013, %v1012
    %v1015 = vmul.f32 0.5, %v1014
    %v1016 = vsub.f32 1.5, %v1015
    %v1017 = vmul.f32 %v1012, %v1016
    %vm1018 = vweird.f32 %v1008
    %vm1019 = vweird.f32 %v1012
    %vm1020 = vmor %vm1018, %vm1019
    %v1021 = vsel %vm1020, %v1012, %v1017
    %v1022 = vrsqrt.pop %v1009
    %v1023 = vmul.f32 %v1022, %v1009
    %v1024 = vmul.f32 %v1023, %v1022
    %v1025 = vmul.f32 0.5, %v1024
    %v1026 = vsub.f32 1.5, %v1025
    %v1027 = vmul.f32 %v1022, %v1026
    %vm1028 = vweird.f32 %v1009
    %vm1029 = vweird.f32 %v1022
    %vm1030 = vmor %vm1028, %vm1029
    %v1031 = vsel %vm1030, %v1022, %v1027
    %v1032 = vrsqrt.pop %v1010
    %v1033 = vmul.f32 %v1032, %v1010
    %v1034 = vmul.f32 %v1033, %v1032
    %v1035 = vmul.f32 0.5, %v1034
    %v1036 = vsub.f32 1.5, %v1035
    %v1037 = vmul.f32 %v1032, %v1036
    %vm1038 = vweird.f32 %v1010
    %vm1039 = vweird.f32 %v1032
    %vm1040 = vmor %vm1038, %vm1039
    %v1041 = vsel %vm1040, %v1032, %v1037
    %v1042 = vrsqrt.pop %v1011
    %v1043 = vmul.f32 %v1042, %v1011
    %v1044 = vmul.f32 %v1043, %v1042
    %v1045 = vmul.f32 0.5, %v1044
    %v1046 = vsub.f32 1.5, %v1045
    %v1047 = vmul.f32 %v1042, %v1046
    %vm1048 = vweird.f32 %v1011
    %vm1049 = vweird.f32 %v1042
    %vm1050 = vmor %vm1048, %vm1049
    %v1051 = vsel %vm1050, %v1042, %v1047
    %v1052 = vmul.f32 %v984, %v1021
    %v1053 = vmul.f32 %v985, %v1031
    %v1054 = vmul.f32 %v986, %v1041
    %v1055 = vmul.f32 %v987, %v1051
    %v1057 = vperm.slane %v966, 0
    %v1059 = vmul.f32 %v1052, %v1057
    %v1060 = vmul.f32 %v1053, %v1057
    %v1061 = vmul.f32 %v1054, %v1057
    %v1062 = vmul.f32 %v1055, %v1057
    %v1064 = vperm.slane %v967, 0
    %v1066 = vadd.f32 %v1059, %v1064
    %v1067 = vadd.f32 %v1060, %v1064
    %v1068 = vadd.f32 %v1061, %v1064
    %v1069 = vadd.f32 %v1062, %v1064
    %1070 = vst.msk [vmem:[#allocation11] sm:$0xff] %vm143, %v1066
    %1071 = vst.msk [vmem:[#allocation11 + $0x8] sm:$0xff] %vm143, %v1067
    %1072 = vst.msk [vmem:[#allocation11 + $0x10] sm:$0xff] %vm143, %v1068
    %1073 = vst.msk [vmem:[#allocation11 + $0x18] sm:$0xff] %vm143, %v1069
    // Predicated region
    $region94: #{attention_block.1} parent=1 // pred_check
      _
    $region95: #{attention_block.1} parent=1 // pred_check_branch
      %1075 = sbr.rel (0) target = $region97
    $region96: #{attention_block.1} parent=1 // pred_region
      %1077 = vsyncadd [#allocation5], 0
      %s1078 = sshll.u32 [#allocation11], 4
      %s1079 = int_to_ptr.vmem [resolvable:$true] %s1078
      %s1080 = sshll.u32 %s19, 4
      %s1081 = int_to_ptr.hbm [resolvable:$true] %s1080
      %1086 = dma.vmem_to_hbm [thread:$0]  %s1079, 512, %s1081, [#allocation5], 128, 128, 8
    $region97: #{attention_block.1} parent=1 // pred_fallthru
      _
    // Predicated region
    $region98: #{attention_block.1} parent=1 // pred_check
      _
    $region99: #{attention_block.1} parent=1 // pred_check_branch
      %1088 = sbr.rel (0) target = $region101
    $region100: #{attention_block.1} parent=1 // pred_region
      %1090 = dma.done [#allocation5], 512
    $region101: #{attention_block.1} parent=1 // pred_fallthru
      _
    %1091 = vsyncpa [#allocation4], 1
    %1092 = vsyncpa [#allocation7], 1
    %1093 = vsyncpa [#allocation10], 1
    %1094 = vsyncpa [#allocation5], 1

</llo_original>
